<compile_context>
chip_gen: v7x
topology: tpu7x:2x2x1
jax: 0.10.0
libtpu: 0.0.40
codegen_flags: <defaults>
</compile_context>

<pallas_src>
import functools

import jax
import jax.numpy as jnp
from jax import lax
from jax.experimental import pallas as pl
from jax.experimental.pallas import tpu as pltpu


def _img_aug_kernel(off_ref, fac_ref, x_ref, o_ref, *, C, H, W, T, Bblk):
    """Fused translation + color-jitter augmentation for Bblk images.

    off_ref: (2B,) int32 in SMEM   -- per-sample (dy, dx) crop offsets, flattened
    fac_ref: (2B,) float32 in SMEM -- per-sample (brightness, contrast), flattened
    x_ref:   (Bblk, C, H, W) VMEM input block
    o_ref:   (Bblk, C, H, W) VMEM output block
    """
    g = pl.program_id(0)

    # ---- loop-invariant iotas (hoisted once per grid step) -------------------
    ii_v = jax.lax.broadcasted_iota(jnp.int32, (H, H), 0)   # dest row
    kk_v = jax.lax.broadcasted_iota(jnp.int32, (H, H), 1)   # source row
    diff_v = kk_v - ii_v                                     # == sy -> src row i+sy
    kk_h = jax.lax.broadcasted_iota(jnp.int32, (W, W), 0)    # source col
    jj_h = jax.lax.broadcasted_iota(jnp.int32, (W, W), 1)    # dest col
    diff_h = kk_h - jj_h                                     # == sx -> src col j+sx
    rows = jax.lax.broadcasted_iota(jnp.int32, (H, W), 0)
    cols = jax.lax.broadcasted_iota(jnp.int32, (H, W), 1)
    inv_n = jnp.float32(1.0 / (C * H * W))

    def body(bb, carry):
        b = g * Bblk + bb
        dy = jnp.clip(off_ref[2 * b], 0, 2 * T)      # clamp -> stays in-window
        dx = jnp.clip(off_ref[2 * b + 1], 0, 2 * T)
        bright = fac_ref[2 * b]
        contrast = fac_ref[2 * b + 1]
        sy = dy - T                                   # vertical shift in [-T, T]
        sx = dx - T                                   # horizontal shift in [-T, T]

        # One-hot shift matrices; all-zero rows/cols implement the zero border.
        perm_v = (diff_v == sy).astype(jnp.float32)   # (H, H)
        perm_h = (diff_h == sx).astype(jnp.float32)   # (W, W)
        # Source pixels that survive the crop (for the per-image mean).
        valid = (((rows >= sy) & (rows < H + sy)) &
                 ((cols >= sx) & (cols < W + sx))).astype(jnp.float32)

        # ---- pass 1: crop-window sum (per-image mean for contrast) ----------
        tot = jnp.float32(0.0)
        for c in range(C):
            tot = tot + jnp.sum(x_ref[bb, c] * valid)

        # color jitter folded into one FMA per pixel:
        #   out = (bright*contrast)*crop + bright*mean(crop)*(1-contrast)
        mean_b = tot * inv_n * bright
        scale = bright * contrast
        shift = mean_b * (1.0 - contrast)

        # ---- pass 2: translation on the MXU + fused FMA + clip, one whole
        #      (H, W) slab store per channel (single store pass per element).
        for c in range(C):
            xs = jnp.dot(x_ref[bb, c], perm_h, preferred_element_type=jnp.float32)
            xs = jnp.dot(perm_v, xs, preferred_element_type=jnp.float32)
            o_ref[bb, c] = jnp.clip(scale * xs + shift, 0.0, 1.0).astype(o_ref.dtype)
        return carry

    lax.fori_loop(0, Bblk, body, 0)


def img_aug_pallas(x, offsets, factors, *, T=2, bblk=None):
    """Apply the BasePolicy.img_aug pipeline (translation + color jitter).

    x:       (B, C, H, W) float32, values in [0, 1]
    offsets: (B, 2) int32, crop offsets in [0, 2T]
    factors: (B, 2) float32, (brightness, contrast) factors
    """
    B, C, H, W = x.shape
    x = x.astype(jnp.float32)
    per_img = C * H * W * 4

    try:
        vmem_cap = int(pltpu.get_tpu_info().vmem_capacity_bytes)
    except Exception:
        vmem_cap = 64 << 20                     # conservative (v7x per-TC)

    if bblk is None:
        # Big blocks amortize the ~0.35 us/step overhead; stay well inside
        # VMEM with double-buffered in + out blocks (4 * block_bytes).
        target = min(12 << 20, vmem_cap // 10)
        bblk = max(1, min(B, max(1, target // per_img)))
    bblk = max(1, min(int(bblk), B))
    if B >= 2:
        # Keep grid >= 2 so megacore parts can shard the "parallel" axis.
        bblk = min(bblk, max(1, B // 2))
    while B % bblk:                             # TODO(synk): prime B degrades to bblk=1
        bblk -= 1

    # Flatten per-sample params to 1-D for compact SMEM residency.
    off_flat = offsets.reshape(-1).astype(jnp.int32)
    fac_flat = factors.reshape(-1).astype(jnp.float32)

    kernel = functools.partial(_img_aug_kernel, C=C, H=H, W=W, T=T, Bblk=bblk)

    block_bytes = bblk * per_img
    need = 4 * block_bytes + (4 << 20)          # 2x double-buffered in + out, + slack
    vmem_limit = int(min(max(need, 32 << 20), max(need, vmem_cap * 3 // 4)))

    return pl.pallas_call(
        kernel,
        out_shape=jax.ShapeDtypeStruct((B, C, H, W), jnp.float32),
        grid_spec=pltpu.PrefetchScalarGridSpec(
            num_scalar_prefetch=2,              # offsets, factors -> SMEM
            grid=(B // bblk,),
            in_specs=[
                pl.BlockSpec((bblk, C, H, W), lambda g, off, fac: (g, 0, 0, 0)),
            ],
            out_specs=pl.BlockSpec((bblk, C, H, W), lambda g, off, fac: (g, 0, 0, 0)),
        ),
        compiler_params=pltpu.CompilerParams(
            dimension_semantics=("parallel",),
            vmem_limit_bytes=vmem_limit,
        ),
    )(off_flat, fac_flat, x)


def img_aug_reference(x, offsets, factors, *, T=2):
    """Pure-JAX reference of the same augmentation (for correctness check)."""
    B, C, H, W = x.shape
    xp = jnp.pad(x, ((0, 0), (0, 0), (T, T), (T, T)))
    outs = []
    for i in range(B):
        dy = int(offsets[i, 0])
        dx = int(offsets[i, 1])
        img = xp[i, :, dy:dy + H, dx:dx + W] * factors[i, 0]
        mean = jnp.mean(img)
        out = (img - mean) * factors[i, 1] + mean
        outs.append(jnp.clip(out, 0.0, 1.0))
    return jnp.stack(outs)


if __name__ == "__main__":
    # Small deterministic example consistent with shape_meta['all_shapes']
    # ['agentview_rgb'] (RGB image observation), shrunk for test.
    key = jax.random.PRNGKey(0)
    k_img, k_off, k_fac = jax.random.split(key, 3)

    B, C, H, W = 4, 3, 16, 16
    T = 2  # translation-aug padding / max shift

    x = jax.random.uniform(k_img, (B, C, H, W), dtype=jnp.float32)
    offsets = jax.random.randint(k_off, (B, 2), 0, 2 * T + 1, dtype=jnp.int32)
    # Brightness in [0.8, 1.2], contrast in [0.8, 1.2].
    factors = 0.8 + 0.4 * jax.random.uniform(k_fac, (B, 2), dtype=jnp.float32)

    out = img_aug_pallas(x, offsets, factors, T=T)   # heuristic picks bblk=2 -> grid=(2,)
    out = jax.block_until_ready(out)

    ref = img_aug_reference(x, offsets, factors, T=T)
    assert out.shape == (B, C, H, W)
    assert jnp.allclose(out, ref, atol=1e-5, rtol=1e-5), "mismatch vs JAX reference"

    print("KERNEL_OK")
</pallas_src>

<mosaic_0001>
module attributes {stable_mosaic.version = 11 : i64} {
  func.func @_img_aug_kernel(%arg0: i32, %arg1: memref<8xi32, #tpu.memory_space<smem>>, %arg2: memref<8xf32, #tpu.memory_space<smem>>, %arg3: memref<2x3x16x16xf32, #tpu.memory_space<vmem>>, %arg4: memref<2x3x16x16xf32, #tpu.memory_space<vmem>>) attributes {dimension_semantics = [#tpu.dimension_semantics<parallel>], iteration_bounds = array<i64: 2>, scalar_prefetch = 2 : i64, scratch_operands = 0 : i64, tpu.core_type = #tpu.core_type<tc>, window_params = [{transform_indices = @transform_0, window_bounds = array<i64: 2, 3, 16, 16>}, {transform_indices = @transform_1, window_bounds = array<i64: 2, 3, 16, 16>}]} {
    %0 = tpu.iota {dimensions = array<i32: 0>} : vector<16x16xi32>
    %1 = tpu.iota {dimensions = array<i32: 1>} : vector<16x16xi32>
    %2 = arith.subi %1, %0 : vector<16x16xi32>
    %3 = tpu.iota {dimensions = array<i32: 0>} : vector<16x16xi32>
    %4 = tpu.iota {dimensions = array<i32: 1>} : vector<16x16xi32>
    %5 = arith.subi %3, %4 : vector<16x16xi32>
    %6 = tpu.iota {dimensions = array<i32: 0>} : vector<16x16xi32>
    %7 = tpu.iota {dimensions = array<i32: 1>} : vector<16x16xi32>
    %cst = arith.constant 0.00130208337 : f32
    %c0_i32 = arith.constant 0 : i32
    %c2_i32 = arith.constant 2 : i32
    %8 = arith.addi %c0_i32, %c2_i32 : i32
    %c1_i32 = arith.constant 1 : i32
    scf.for %arg5 = %c0_i32 to %8 step %c1_i32  : i32 {
      %c2_i32_1 = arith.constant 2 : i32
      %9 = arith.muli %arg0, %c2_i32_1 : i32
      %10 = arith.addi %9, %arg5 : i32
      %c2_i32_2 = arith.constant 2 : i32
      %11 = arith.muli %c2_i32_2, %10 : i32
      %12 = arith.index_cast %11 : i32 to index
      %13 = memref.load %arg1[%12] : memref<8xi32, #tpu.memory_space<smem>>
      %c0_i32_3 = arith.constant 0 : i32
      %c4_i32 = arith.constant 4 : i32
      %14 = arith.maxsi %c0_i32_3, %13 : i32
      %15 = arith.minsi %c4_i32, %14 : i32
      %c2_i32_4 = arith.constant 2 : i32
      %16 = arith.muli %c2_i32_4, %10 : i32
      %c1_i32_5 = arith.constant 1 : i32
      %17 = arith.addi %16, %c1_i32_5 : i32
      %18 = arith.index_cast %17 : i32 to index
      %19 = memref.load %arg1[%18] : memref<8xi32, #tpu.memory_space<smem>>
      %c0_i32_6 = arith.constant 0 : i32
      %c4_i32_7 = arith.constant 4 : i32
      %20 = arith.maxsi %c0_i32_6, %19 : i32
      %21 = arith.minsi %c4_i32_7, %20 : i32
      %c2_i32_8 = arith.constant 2 : i32
      %22 = arith.muli %c2_i32_8, %10 : i32
      %23 = arith.index_cast %22 : i32 to index
      %24 = memref.load %arg2[%23] : memref<8xf32, #tpu.memory_space<smem>>
      %c2_i32_9 = arith.constant 2 : i32
      %25 = arith.muli %c2_i32_9, %10 : i32
      %c1_i32_10 = arith.constant 1 : i32
      %26 = arith.addi %25, %c1_i32_10 : i32
      %27 = arith.index_cast %26 : i32 to index
      %28 = memref.load %arg2[%27] : memref<8xf32, #tpu.memory_space<smem>>
      %c2_i32_11 = arith.constant 2 : i32
      %29 = arith.subi %15, %c2_i32_11 : i32
      %c2_i32_12 = arith.constant 2 : i32
      %30 = arith.subi %21, %c2_i32_12 : i32
      %31 = vector.broadcast %29 : i32 to vector<16x16xi32>
      %32 = arith.cmpi eq, %2, %31 : vector<16x16xi32>
      %33 = arith.extui %32 : vector<16x16xi1> to vector<16x16xi32>
      %34 = arith.sitofp %33 : vector<16x16xi32> to vector<16x16xf32>
      %35 = vector.broadcast %30 : i32 to vector<16x16xi32>
      %36 = arith.cmpi eq, %5, %35 : vector<16x16xi32>
      %37 = arith.extui %36 : vector<16x16xi1> to vector<16x16xi32>
      %38 = arith.sitofp %37 : vector<16x16xi32> to vector<16x16xf32>
      %39 = vector.broadcast %29 : i32 to vector<16x16xi32>
      %40 = arith.cmpi sge, %6, %39 : vector<16x16xi32>
      %c16_i32 = arith.constant 16 : i32
      %41 = arith.addi %c16_i32, %29 : i32
      %42 = vector.broadcast %41 : i32 to vector<16x16xi32>
      %43 = arith.cmpi slt, %6, %42 : vector<16x16xi32>
      %44 = arith.andi %40, %43 : vector<16x16xi1>
      %45 = vector.broadcast %30 : i32 to vector<16x16xi32>
      %46 = arith.cmpi sge, %7, %45 : vector<16x16xi32>
      %c16_i32_13 = arith.constant 16 : i32
      %47 = arith.addi %c16_i32_13, %30 : i32
      %48 = vector.broadcast %47 : i32 to vector<16x16xi32>
      %49 = arith.cmpi slt, %7, %48 : vector<16x16xi32>
      %50 = arith.andi %46, %49 : vector<16x16xi1>
      %51 = arith.andi %44, %50 : vector<16x16xi1>
      %52 = arith.extui %51 : vector<16x16xi1> to vector<16x16xi32>
      %53 = arith.sitofp %52 : vector<16x16xi32> to vector<16x16xf32>
      %54 = arith.index_cast %arg5 : i32 to index
      %c0 = arith.constant 0 : index
      %c0_14 = arith.constant 0 : index
      %c0_15 = arith.constant 0 : index
      %55 = vector.load %arg3[%54, %c0, %c0_14, %c0_15] : memref<2x3x16x16xf32, #tpu.memory_space<vmem>>, vector<1x1x16x16xf32>
      %56 = vector.shape_cast %55 : vector<1x1x16x16xf32> to vector<16x16xf32>
      %57 = arith.mulf %56, %53 : vector<16x16xf32>
      %58 = vector.shape_cast %57 : vector<16x16xf32> to vector<1x16x16xf32>
      %cst_16 = arith.constant dense<0.000000e+00> : vector<1xf32>
      %59 = vector.multi_reduction <add>, %58, %cst_16 [1, 2] : vector<1x16x16xf32> to vector<1xf32>
      %60 = vector.shape_cast %59 : vector<1xf32> to vector<1x1x1xf32>
      %61 = vector.extract %60[0, 0, 0] : f32 from vector<1x1x1xf32>
      %cst_17 = arith.constant 0.000000e+00 : f32
      %62 = arith.addf %cst_17, %61 : f32
      %63 = arith.index_cast %arg5 : i32 to index
      %c1 = arith.constant 1 : index
      %c0_18 = arith.constant 0 : index
      %c0_19 = arith.constant 0 : index
      %64 = vector.load %arg3[%63, %c1, %c0_18, %c0_19] : memref<2x3x16x16xf32, #tpu.memory_space<vmem>>, vector<1x1x16x16xf32>
      %65 = vector.shape_cast %64 : vector<1x1x16x16xf32> to vector<16x16xf32>
      %66 = arith.mulf %65, %53 : vector<16x16xf32>
      %67 = vector.shape_cast %66 : vector<16x16xf32> to vector<1x16x16xf32>
      %cst_20 = arith.constant dense<0.000000e+00> : vector<1xf32>
      %68 = vector.multi_reduction <add>, %67, %cst_20 [1, 2] : vector<1x16x16xf32> to vector<1xf32>
      %69 = vector.shape_cast %68 : vector<1xf32> to vector<1x1x1xf32>
      %70 = vector.extract %69[0, 0, 0] : f32 from vector<1x1x1xf32>
      %71 = arith.addf %62, %70 : f32
      %72 = arith.index_cast %arg5 : i32 to index
      %c2 = arith.constant 2 : index
      %c0_21 = arith.constant 0 : index
      %c0_22 = arith.constant 0 : index
      %73 = vector.load %arg3[%72, %c2, %c0_21, %c0_22] : memref<2x3x16x16xf32, #tpu.memory_space<vmem>>, vector<1x1x16x16xf32>
      %74 = vector.shape_cast %73 : vector<1x1x16x16xf32> to vector<16x16xf32>
      %75 = arith.mulf %74, %53 : vector<16x16xf32>
      %76 = vector.shape_cast %75 : vector<16x16xf32> to vector<1x16x16xf32>
      %cst_23 = arith.constant dense<0.000000e+00> : vector<1xf32>
      %77 = vector.multi_reduction <add>, %76, %cst_23 [1, 2] : vector<1x16x16xf32> to vector<1xf32>
      %78 = vector.shape_cast %77 : vector<1xf32> to vector<1x1x1xf32>
      %79 = vector.extract %78[0, 0, 0] : f32 from vector<1x1x1xf32>
      %80 = arith.addf %71, %79 : f32
      %81 = arith.mulf %80, %cst : f32
      %82 = arith.mulf %81, %24 : f32
      %83 = arith.mulf %24, %28 : f32
      %cst_24 = arith.constant 1.000000e+00 : f32
      %84 = arith.subf %cst_24, %28 : f32
      %85 = arith.mulf %82, %84 : f32
      %86 = arith.index_cast %arg5 : i32 to index
      %c0_25 = arith.constant 0 : index
      %c0_26 = arith.constant 0 : index
      %c0_27 = arith.constant 0 : index
      %87 = vector.load %arg3[%86, %c0_25, %c0_26, %c0_27] : memref<2x3x16x16xf32, #tpu.memory_space<vmem>>, vector<1x1x16x16xf32>
      %88 = vector.shape_cast %87 : vector<1x1x16x16xf32> to vector<16x16xf32>
      %cst_28 = arith.constant dense<0.000000e+00> : vector<16x16xf32>
      %89 = tpu.matmul %88, %38, %cst_28 {dimension_numbers = #tpu.dot_dimension_numbers<[1], [0], [0], [1], [0, 0, 1, 1], [], []>} : vector<16x16xf32>, vector<16x16xf32>, vector<16x16xf32> -> vector<16x16xf32>
      %cst_29 = arith.constant dense<0.000000e+00> : vector<16x16xf32>
      %90 = tpu.matmul %34, %89, %cst_29 {dimension_numbers = #tpu.dot_dimension_numbers<[1], [0], [0], [1], [0, 0, 1, 1], [], []>} : vector<16x16xf32>, vector<16x16xf32>, vector<16x16xf32> -> vector<16x16xf32>
      %91 = vector.broadcast %83 : f32 to vector<16x16xf32>
      %92 = arith.mulf %91, %90 : vector<16x16xf32>
      %93 = vector.broadcast %85 : f32 to vector<16x16xf32>
      %94 = arith.addf %92, %93 : vector<16x16xf32>
      %cst_30 = arith.constant 0.000000e+00 : f32
      %cst_31 = arith.constant 1.000000e+00 : f32
      %95 = vector.broadcast %cst_30 : f32 to vector<16x16xf32>
      %96 = arith.maximumf %95, %94 : vector<16x16xf32>
      %97 = vector.broadcast %cst_31 : f32 to vector<16x16xf32>
      %98 = arith.minimumf %97, %96 : vector<16x16xf32>
      %99 = arith.index_cast %arg5 : i32 to index
      %c0_32 = arith.constant 0 : index
      %c0_33 = arith.constant 0 : index
      %c0_34 = arith.constant 0 : index
      %100 = vector.load %arg4[%99, %c0_32, %c0_33, %c0_34] : memref<2x3x16x16xf32, #tpu.memory_space<vmem>>, vector<1x1x16x16xf32>
      %101 = vector.shape_cast %100 : vector<1x1x16x16xf32> to vector<16x16xf32>
      %102 = vector.shape_cast %98 : vector<16x16xf32> to vector<1x1x16x16xf32>
      tpu.vector_store %arg4[%99, %c0_32, %c0_33, %c0_34], %102 {strides = array<i32>} : memref<2x3x16x16xf32, #tpu.memory_space<vmem>>, vector<1x1x16x16xf32>,
      %103 = arith.index_cast %arg5 : i32 to index
      %c1_35 = arith.constant 1 : index
      %c0_36 = arith.constant 0 : index
      %c0_37 = arith.constant 0 : index
      %104 = vector.load %arg3[%103, %c1_35, %c0_36, %c0_37] : memref<2x3x16x16xf32, #tpu.memory_space<vmem>>, vector<1x1x16x16xf32>
      %105 = vector.shape_cast %104 : vector<1x1x16x16xf32> to vector<16x16xf32>
      %cst_38 = arith.constant dense<0.000000e+00> : vector<16x16xf32>
      %106 = tpu.matmul %105, %38, %cst_38 {dimension_numbers = #tpu.dot_dimension_numbers<[1], [0], [0], [1], [0, 0, 1, 1], [], []>} : vector<16x16xf32>, vector<16x16xf32>, vector<16x16xf32> -> vector<16x16xf32>
      %cst_39 = arith.constant dense<0.000000e+00> : vector<16x16xf32>
      %107 = tpu.matmul %34, %106, %cst_39 {dimension_numbers = #tpu.dot_dimension_numbers<[1], [0], [0], [1], [0, 0, 1, 1], [], []>} : vector<16x16xf32>, vector<16x16xf32>, vector<16x16xf32> -> vector<16x16xf32>
      %108 = vector.broadcast %83 : f32 to vector<16x16xf32>
      %109 = arith.mulf %108, %107 : vector<16x16xf32>
      %110 = vector.broadcast %85 : f32 to vector<16x16xf32>
      %111 = arith.addf %109, %110 : vector<16x16xf32>
      %cst_40 = arith.constant 0.000000e+00 : f32
      %cst_41 = arith.constant 1.000000e+00 : f32
      %112 = vector.broadcast %cst_40 : f32 to vector<16x16xf32>
      %113 = arith.maximumf %112, %111 : vector<16x16xf32>
      %114 = vector.broadcast %cst_41 : f32 to vector<16x16xf32>
      %115 = arith.minimumf %114, %113 : vector<16x16xf32>
      %116 = arith.index_cast %arg5 : i32 to index
      %c1_42 = arith.constant 1 : index
      %c0_43 = arith.constant 0 : index
      %c0_44 = arith.constant 0 : index
      %117 = vector.load %arg4[%116, %c1_42, %c0_43, %c0_44] : memref<2x3x16x16xf32, #tpu.memory_space<vmem>>, vector<1x1x16x16xf32>
      %118 = vector.shape_cast %117 : vector<1x1x16x16xf32> to vector<16x16xf32>
      %119 = vector.shape_cast %115 : vector<16x16xf32> to vector<1x1x16x16xf32>
      tpu.vector_store %arg4[%116, %c1_42, %c0_43, %c0_44], %119 {strides = array<i32>} : memref<2x3x16x16xf32, #tpu.memory_space<vmem>>, vector<1x1x16x16xf32>,
      %120 = arith.index_cast %arg5 : i32 to index
      %c2_45 = arith.constant 2 : index
      %c0_46 = arith.constant 0 : index
      %c0_47 = arith.constant 0 : index
      %121 = vector.load %arg3[%120, %c2_45, %c0_46, %c0_47] : memref<2x3x16x16xf32, #tpu.memory_space<vmem>>, vector<1x1x16x16xf32>
      %122 = vector.shape_cast %121 : vector<1x1x16x16xf32> to vector<16x16xf32>
      %cst_48 = arith.constant dense<0.000000e+00> : vector<16x16xf32>
      %123 = tpu.matmul %122, %38, %cst_48 {dimension_numbers = #tpu.dot_dimension_numbers<[1], [0], [0], [1], [0, 0, 1, 1], [], []>} : vector<16x16xf32>, vector<16x16xf32>, vector<16x16xf32> -> vector<16x16xf32>
      %cst_49 = arith.constant dense<0.000000e+00> : vector<16x16xf32>
      %124 = tpu.matmul %34, %123, %cst_49 {dimension_numbers = #tpu.dot_dimension_numbers<[1], [0], [0], [1], [0, 0, 1, 1], [], []>} : vector<16x16xf32>, vector<16x16xf32>, vector<16x16xf32> -> vector<16x16xf32>
      %125 = vector.broadcast %83 : f32 to vector<16x16xf32>
      %126 = arith.mulf %125, %124 : vector<16x16xf32>
      %127 = vector.broadcast %85 : f32 to vector<16x16xf32>
      %128 = arith.addf %126, %127 : vector<16x16xf32>
      %cst_50 = arith.constant 0.000000e+00 : f32
      %cst_51 = arith.constant 1.000000e+00 : f32
      %129 = vector.broadcast %cst_50 : f32 to vector<16x16xf32>
      %130 = arith.maximumf %129, %128 : vector<16x16xf32>
      %131 = vector.broadcast %cst_51 : f32 to vector<16x16xf32>
      %132 = arith.minimumf %131, %130 : vector<16x16xf32>
      %133 = arith.index_cast %arg5 : i32 to index
      %c2_52 = arith.constant 2 : index
      %c0_53 = arith.constant 0 : index
      %c0_54 = arith.constant 0 : index
      %134 = vector.load %arg4[%133, %c2_52, %c0_53, %c0_54] : memref<2x3x16x16xf32, #tpu.memory_space<vmem>>, vector<1x1x16x16xf32>
      %135 = vector.shape_cast %134 : vector<1x1x16x16xf32> to vector<16x16xf32>
      %136 = vector.shape_cast %132 : vector<16x16xf32> to vector<1x1x16x16xf32>
      tpu.vector_store %arg4[%133, %c2_52, %c0_53, %c0_54], %136 {strides = array<i32>} : memref<2x3x16x16xf32, #tpu.memory_space<vmem>>, vector<1x1x16x16xf32>,
    }
    %c2_i32_0 = arith.constant 2 : i32
    return
  }
  func.func @transform_0(%arg0: i32, %arg1: memref<8xi32, #tpu.memory_space<smem>>, %arg2: memref<8xf32, #tpu.memory_space<smem>>) -> (i32, i32, i32, i32) {
    %c0_i32 = arith.constant 0 : i32
    %c0_i32_0 = arith.constant 0 : i32
    %c0_i32_1 = arith.constant 0 : i32
    %c0_i32_2 = arith.constant 0 : i32
    return %arg0, %c0_i32, %c0_i32_0, %c0_i32_1 : i32, i32, i32, i32
  }
  func.func @transform_1(%arg0: i32, %arg1: memref<8xi32, #tpu.memory_space<smem>>, %arg2: memref<8xf32, #tpu.memory_space<smem>>) -> (i32, i32, i32, i32) {
    %c0_i32 = arith.constant 0 : i32
    %c0_i32_0 = arith.constant 0 : i32
    %c0_i32_1 = arith.constant 0 : i32
    %c0_i32_2 = arith.constant 0 : i32
    return %arg0, %c0_i32, %c0_i32_0, %c0_i32_1 : i32, i32, i32, i32
  }
}

</mosaic_0001>

<llo_original>
// kernel: tpu_custom_call.1
$region0: #{tpu_custom_call.1}
  #allocation0 [shape = 'u32[]', space=smem, size = 0x4, offset = 0x4, fixed_abs, tag = 'smem constant byte address 0x4 - core index']
  #allocation1 [shape = 'u32[144,128]{1,0:T(1,128)}', space=vmem, size = 0x12000, scoped, tag = 'internal scratch']
  #allocation2 [shape = 's32[1]{0}', space=sflag, size = 0x4, scoped, tag = 'scoped memory for tpu_custom_call.1']
  #allocation3 [shape = 'u8[512]{0}', space=smem, size = 0x200, scoped, tag = 'prefetched SMEM operand 0']
  #allocation4 [shape = 'u8[512]{0}', space=smem, size = 0x200, scoped, tag = 'prefetched SMEM operand 1']
  %s0 = inlined_call_operand.hbm [shape: s32[8], index: 0, kind: input, shape index: {}]
  %s1 = inlined_call_operand.vmem [shape: f32[8], index: 1, kind: input, shape index: {}]
  %s2 = inlined_call_operand.hbm [shape: f32[4,3,16,16], index: 2, kind: input, shape index: {}]
  %s3 = inlined_call_operand.hbm [shape: f32[4,3,16,16], index: 3, kind: output, shape index: {}]
  %s4 = sld [smem:[#allocation0]]
  $region48: #{tpu_custom_call.1} parent=0
    _
  %s6 = ssub.s32 1, %s4
  %s7 = scalar_select 0, %s6, %s4
  %9 = dma.hbm_to_smem %s0, 16, [#allocation3], [#allocation2]
  %s10 = sshll.u32 %s1, 4
  %s11 = int_to_ptr.vmem [resolvable:$true] %s10
  %13 = dma.vmem_to_smem %s11, 16, [#allocation4], [#allocation2]
  %14 = dma.done [#allocation2], 32
  %15 = sfence
  $region1: #{tpu_custom_call.1} parent=0
    #allocation5 [shape = 'u8[98304]{0}', space=vmem, size = 0x18000, scoped, tag = 'input window, operand 2']
    #allocation6 [shape = 's32[2]{0}', space=sflag, size = 0x8, scoped, tag = 'scoped memory for tpu_custom_call.1']
    #allocation7 [shape = 's32[2]{0}', space=sflag, size = 0x8, scoped, tag = 'scoped memory for tpu_custom_call.1']
    #allocation8 [shape = 'u8[98304]{0}', space=vmem, size = 0x18000, scoped, tag = 'output window, operand 0']
    %16 = vsyncpa [#allocation6], 0
    %s17 = scalar_lea.sflag [#allocation6], 1
    %18 = vsyncpa %s17, 0
    %19 = vsyncpa [#allocation7], 0
    %s20 = scalar_lea.sflag [#allocation7], 1
    %21 = vsyncpa %s20, 0
    loop: start=0, step=1, limit=4
    $region2: #{tpu_custom_call.1} parent=1 // loop_pre_header
      _
    $region3: #{tpu_custom_call.1} parent=1 // loop_header
      %s23 = sphi 0, %s27
      %p24 = scmp.ge.s32.totalorder %s23, 4
      %s33 = sphi 0, %s35
      %s36 = sphi 0, %s33
      %s37 = sphi 0, %s36
      %s53 = sphi 0, %s37
      %s59 = sphi 0, %s61
      %s62 = sphi 0, %s59
      %s63 = sphi 0, %s62
      %s79 = sphi 0, %s63
    $region4: #{tpu_custom_call.1} parent=1 // loop_header_branch
      %26 = sbr.rel (%p24) target = $region8
    $region5: #{tpu_custom_call.1} parent=1 // loop_body
      %s28 = ssub.s32 %s23, 1
      %s29 = ssub.s32 %s23, 2
      %s30 = sadd.s32 %s23, 1
      %s31 = ssub.s32 %s23, %s30
      %p32 = scmp.eq.s32.totalorder %s31, 0
      %s34 = sadd.s32 %s33, 1
      %s35 = scalar_select %p32, %s33, %s34
      %p38 = pneg %p32
      %p39 = scmp.eq.s32.totalorder %s23, 1
      %p40 = por %p38, %p39
      %p41 = scmp.ne.s32.totalorder %s33, %s36
      %p42 = scmp.eq.s32.totalorder %s23, 0
      %p43 = por %p41, %p42
      %p44 = scmp.ne.s32.totalorder %s33, %s36
      %p45 = scmp.eq.s32.totalorder %s28, 1
      %p46 = por %p44, %p45
      %p47 = scmp.ne.s32.totalorder %s36, %s37
      %p48 = scmp.eq.s32.totalorder %s28, 0
      %p49 = por %p47, %p48
      %p50 = scmp.ne.s32.totalorder %s36, %s37
      %p51 = scmp.eq.s32.totalorder %s29, 1
      %p52 = por %p50, %p51
      %p54 = scmp.ne.s32.totalorder %s37, %s53
      %p55 = scmp.eq.s32.totalorder %s29, 0
      %p56 = por %p54, %p55
      %s57 = ssub.s32 %s23, %s30
      %p58 = scmp.eq.s32.totalorder %s57, 0
      %s60 = sadd.s32 %s59, 1
      %s61 = scalar_select %p58, %s59, %s60
      %p64 = pneg %p58
      %p65 = scmp.eq.s32.totalorder %s23, 1
      %p66 = por %p64, %p65
      %p67 = scmp.ne.s32.totalorder %s59, %s62
      %p68 = scmp.eq.s32.totalorder %s23, 0
      %p69 = por %p67, %p68
      %p70 = scmp.ne.s32.totalorder %s59, %s62
      %p71 = scmp.eq.s32.totalorder %s28, 1
      %p72 = por %p70, %p71
      %p73 = scmp.ne.s32.totalorder %s62, %s63
      %p74 = scmp.eq.s32.totalorder %s28, 0
      %p75 = por %p73, %p74
      %p76 = scmp.ne.s32.totalorder %s62, %s63
      %p77 = scmp.eq.s32.totalorder %s29, 1
      %p78 = por %p76, %p77
      %p80 = scmp.ne.s32.totalorder %s63, %s79
      %p81 = scmp.eq.s32.totalorder %s29, 0
      %p82 = por %p80, %p81
      %p83 = scmp.le.s32.totalorder 1, %s23
      %p84 = scmp.lt.s32.totalorder %s23, 3
      %p85 = pnand %p83, %p84
      %p86 = pneg %p85
      // Predicated region
      $region9: #{tpu_custom_call.1} parent=5 // pred_check
        _
      $region10: #{tpu_custom_call.1} parent=5 // pred_check_branch
        %88 = sbr.rel (%p85) target = $region12
      $region11: #{tpu_custom_call.1} parent=5 // pred_region
        %s89 = ssub.s32 %s23, 1
      $region12: #{tpu_custom_call.1} parent=5 // pred_fallthru
        _
      %p90 = scmp.lt.s32.totalorder %s23, 2
      // Predicated region
      $region13: #{tpu_custom_call.1} parent=5 // pred_check
        %p91 = pneg %p90
      $region14: #{tpu_custom_call.1} parent=5 // pred_check_branch
        %93 = sbr.rel (%p91) target = $region16
      $region15: #{tpu_custom_call.1} parent=5 // pred_region
        // Predicated region
        $region17: #{tpu_custom_call.1} parent=15 // pred_check
          %p94 = pneg %p43
        $region18: #{tpu_custom_call.1} parent=15 // pred_check_branch
          %96 = sbr.rel (%p94) target = $region20
        $region19: #{tpu_custom_call.1} parent=15 // pred_region
          %s97 = sand.u32 %s33, 1
          %s98 = scalar_lea.sflag [#allocation6], %s97
          %s99 = sand.u32 %s33, 1
          %s100 = smul.addr %s99, 96
          %s101 = scalar_lea.vmem [#allocation5], %s100
          %s102 = smul.u32 2, %s23
          %s104 = ssub.s32 1536, 1536
          %105 = vsyncadd %s98, %s104
          %s106 = smul.addr %s102, 6
          %s107 = smul.addr %s106, 128
          %s108 = scalar_lea.hbm %s2, %s107
          %s109 = sshll.u32 %s101, 4
          %s110 = int_to_ptr.vmem [resolvable:$true] %s109
          %115 = dma.hbm_to_vmem [thread:$0]  %s108, 1536, %s110, %s98, 128, 128, 8
        $region20: #{tpu_custom_call.1} parent=15 // pred_fallthru
          _
      $region16: #{tpu_custom_call.1} parent=5 // pred_fallthru
        _
      %p116 = scmp.le.s32.totalorder 1, %s23
      %p117 = scmp.lt.s32.totalorder %s23, 3
      %p118 = pnand %p116, %p117
      %p119 = pneg %p118
      // Predicated region
      $region21: #{tpu_custom_call.1} parent=5 // pred_check
        _
      $region22: #{tpu_custom_call.1} parent=5 // pred_check_branch
        %121 = sbr.rel (%p118) target = $region24
      $region23: #{tpu_custom_call.1} parent=5 // pred_region
        %s122 = ssub.s32 %s23, 1
        %s123 = sand.u32 %s36, 1
        %s124 = scalar_lea.sflag [#allocation6], %s123
        %s125 = sand.u32 %s36, 1
        %s126 = smul.addr %s125, 96
        %s127 = scalar_lea.vmem [#allocation5], %s126
        // Predicated region
        $region25: #{tpu_custom_call.1} parent=23 // pred_check
          %p128 = pneg %p49
        $region26: #{tpu_custom_call.1} parent=23 // pred_check_branch
          %130 = sbr.rel (%p128) target = $region28
        $region27: #{tpu_custom_call.1} parent=23 // pred_region
          %131 = dma.done %s124, 1536
        $region28: #{tpu_custom_call.1} parent=23 // pred_fallthru
          _
        %s132 = sand.u32 %s36, 1
        %s133 = scalar_lea.sflag [#allocation6], %s132
        %s134 = sand.u32 %s36, 1
        %s135 = smul.addr %s134, 96
        %s136 = scalar_lea.vmem [#allocation5], %s135
        %p137 = pneg %p49
        %p138 = pneg %p46
        %p139 = pneg %p75
        %p140 = pneg %p72
        %s141 = sand.u32 %s62, 1
        %s142 = scalar_lea.sflag [#allocation7], %s141
        %s143 = sand.u32 %s62, 1
        %s144 = smul.addr %s143, 96
        %s145 = scalar_lea.vmem [#allocation8], %s144
        %s146 = smul.u32 2, %s28
        %s147 = smul.u32 2, %s28
        %v148 = vlaneseq
        %v149 = vshrl.u32 %v148, 7
        %v150 = vadd.s32 %v149, 8
        %v151 = vlaneseq
        %v152 = vand.u32 %v151, 127
        %v153 = vsub.s32 %v152, %v149
        %v154 = vsub.s32 %v152, %v150
        %v155 = vsub.s32 %v149, %v152
        %v156 = vsub.s32 %v150, %v152
        loop: start=0, step=1, limit=2
        $region29: #{tpu_custom_call.1} parent=23 // loop_pre_header
          _
        $region30: #{tpu_custom_call.1} parent=23 // loop_header
          %s158 = sphi 0, %s162
          %p159 = scmp.ge.s32.totalorder %s158, 2
        $region31: #{tpu_custom_call.1} parent=23 // loop_header_branch
          %161 = sbr.rel (%p159) target = $region35
        $region32: #{tpu_custom_call.1} parent=23 // loop_body
          %s163 = smul.u32 %s28, 2
          %s164 = sadd.s32 %s163, %s158
          %s165 = smul.u32 %s164, 2
          %s166 = sld [smem:[#allocation3 + %s165]]
          %p167 = scmp.gt.s32.totalorder %s166, 0
          %s168 = scalar_select %p167, %s166, 0
          %p169 = scmp.lt.s32.totalorder %s168, 4
          %s170 = scalar_select %p169, %s168, 4
          %s171 = sadd.s32 %s165, 1
          %s172 = sld [smem:[#allocation3 + %s171]]
          %p173 = scmp.gt.s32.totalorder %s172, 0
          %s174 = scalar_select %p173, %s172, 0
          %p175 = scmp.lt.s32.totalorder %s174, 4
          %s176 = scalar_select %p175, %s174, 4
          %s177 = sld [smem:[#allocation4 + %s165]]
          %s178 = sld [smem:[#allocation4 + %s171]]
          %s179 = ssub.s32 %s170, 2
          %s180 = ssub.s32 %s176, 2
          %v181 = vstv %s179
          %vm182 = vcmp.eq.s32.totalorder %v153, %v181
          %vm183 = vcmp.eq.s32.totalorder %v154, %v181
          %v184 = vsel %vm182, 1, 0
          %v185 = vsel %vm183, 1, 0
          %v186 = vcvt.s32.f32 %v184
          %v187 = vcvt.s32.f32 %v185
          %v188 = vstv %s180
          %vm189 = vcmp.eq.s32.totalorder %v155, %v188
          %vm190 = vcmp.eq.s32.totalorder %v156, %v188
          %v191 = vsel %vm189, 1, 0
          %v192 = vsel %vm190, 1, 0
          %v193 = vcvt.s32.f32 %v191
          %v194 = vcvt.s32.f32 %v192
          %vm195 = vcmp.ge.s32.totalorder %v149, %v181
          %vm196 = vcmp.ge.s32.totalorder %v150, %v181
          %s197 = sadd.s32 %s170, 14
          %v198 = vstv %s197
          %vm199 = vcmp.lt.s32.totalorder %v149, %v198
          %vm200 = vcmp.lt.s32.totalorder %v150, %v198
          %vm201 = vmand %vm195, %vm199
          %vm202 = vmand %vm196, %vm200
          %vm203 = vcmp.ge.s32.totalorder %v152, %v188
          %s204 = sadd.s32 %s176, 14
          %v205 = vstv %s204
          %vm206 = vcmp.lt.s32.totalorder %v152, %v205
          %vm207 = vmand %vm203, %vm206
          %vm208 = vmand %vm201, %vm207
          %vm209 = vmand %vm202, %vm207
          %v210 = vsel %vm208, 1, 0
          %v211 = vsel %vm209, 1, 0
          %v212 = vcvt.s32.f32 %v210
          %v213 = vcvt.s32.f32 %v211
          %s214 = smul.u32 %s158, 48
          %s215 = scalar_lea.vmem %s127, %s214 [#allocation5]
          %v216 = vld [vmem:[%s215] sm:$0xff]
          %v217 = vld [vmem:[%s215 + $0x8] sm:$0xff]
          %v218 = vmul.f32 %v216, %v212
          %v219 = vmul.f32 %v217, %v213
          %vm220 = vcmask 130048
          %v221 = vsel %vm220, %v218, 0.0
          %v222 = vsel %vm220, %v219, 0.0
          %v223 = vadd.f32 %v221, %v222
          %224 = vadd.xlane.f32.xlu0 %v223
          %v225 = vpop.xlane.xlu0 %224
          %v226 = vrot.slane %v225, 4
          %v227 = vadd.f32 %v225, %v226
          %v228 = vrot.slane %v227, 2
          %v229 = vadd.f32 %v227, %v228
          %v230 = vrot.slane %v229, 1
          %v231 = vadd.f32 %v229, %v230
          %s232 = vtos %v231
          %s233 = sadd.f32 %s232, 0.0
          %s234 = sadd.s32 16, %s214
          %s235 = scalar_lea.vmem %s127, %s234 [#allocation5]
          %v236 = vld [vmem:[%s235] sm:$0xff]
          %v237 = vld [vmem:[%s235 + $0x8] sm:$0xff]
          %v238 = vmul.f32 %v236, %v212
          %v239 = vmul.f32 %v237, %v213
          %v240 = vsel %vm220, %v238, 0.0
          %v241 = vsel %vm220, %v239, 0.0
          %v242 = vadd.f32 %v240, %v241
          %243 = vadd.xlane.f32.xlu0 %v242
          %v244 = vpop.xlane.xlu0 %243
          %v245 = vrot.slane %v244, 4
          %v246 = vadd.f32 %v244, %v245
          %v247 = vrot.slane %v246, 2
          %v248 = vadd.f32 %v246, %v247
          %v249 = vrot.slane %v248, 1
          %v250 = vadd.f32 %v248, %v249
          %s251 = vtos %v250
          %s252 = sadd.f32 %s233, %s251
          %s253 = sadd.s32 32, %s214
          %s254 = scalar_lea.vmem %s127, %s253 [#allocation5]
          %v255 = vld [vmem:[%s254] sm:$0xff]
          %v256 = vld [vmem:[%s254 + $0x8] sm:$0xff]
          %v257 = vmul.f32 %v255, %v212
          %v258 = vmul.f32 %v256, %v213
          %v259 = vsel %vm220, %v257, 0.0
          %v260 = vsel %vm220, %v258, 0.0
          %v261 = vadd.f32 %v259, %v260
          %262 = vadd.xlane.f32.xlu0 %v261
          %v263 = vpop.xlane.xlu0 %262
          %v264 = vrot.slane %v263, 4
          %v265 = vadd.f32 %v263, %v264
          %v266 = vrot.slane %v265, 2
          %v267 = vadd.f32 %v265, %v266
          %v268 = vrot.slane %v267, 1
          %v269 = vadd.f32 %v267, %v268
          %s270 = vtos %v269
          %s271 = sadd.f32 %s252, %s270
          %s272 = smul.f32 %s271, 0.0013020834
          %s273 = smul.f32 %s272, %s177
          %s274 = smul.f32 %s177, %s178
          %s275 = ssub.f32 1.0, %s178
          %s276 = smul.f32 %s273, %s275
          %v278 = vsel %vm220, %v216, 0
          %v281 = vsel %vm220, %v217, 0
          %283 = vmatprep.subr.mxu0 0.0
          %284 = vmatpush1.msra.mxu0 %v193
          %285 = vmatprep.subr.mxu0 0.0
          %286 = vmatpush1.msra.mxu0 %v194
          %287 = vmatprep.subr.mxu0 0.0
          %288 = vmatpush1.msra.mxu0 0.0
          %289 = vmatprep.subr.mxu0 0.0
          %290 = vmatpush1.msra.mxu0 0.0
          %291 = vmatprep.subr.mxu0 0.0
          %292 = vmatpush1.msra.mxu0 0.0
          %293 = vmatprep.subr.mxu0 0.0
          %294 = vmatpush1.msra.mxu0 0.0
          %295 = vmatprep.subr.mxu0 0.0
          %296 = vmatpush1.msra.mxu0 0.0
          %297 = vmatprep.subr.mxu0 0.0
          %298 = vmatpush1.msra.mxu0 0.0
          %299 = vmatprep.subr.mxu0 0.0
          %300 = vmatpush1.msra.mxu0 0.0
          %301 = vmatprep.subr.mxu0 0.0
          %302 = vmatpush1.msra.mxu0 0.0
          %303 = vmatprep.subr.mxu0 0.0
          %304 = vmatpush1.msra.mxu0 0.0
          %305 = vmatprep.subr.mxu0 0.0
          %306 = vmatpush1.msra.mxu0 0.0
          %307 = vmatprep.subr.mxu0 0.0
          %308 = vmatpush1.msra.mxu0 0.0
          %309 = vmatprep.subr.mxu0 0.0
          %310 = vmatpush1.msra.mxu0 0.0
          %311 = vmatprep.subr.mxu0 0.0
          %312 = vmatpush1.msra.mxu0 0.0
          %313 = vmatprep.subr.mxu0 0.0
          %314 = vmatpush1.msra.mxu0 0.0
          %315 = vmatprep.subr.mxu0 0.0
          %316 = vmatpush1.msra.mxu0 0.0
          %317 = vmatprep.subr.mxu0 0.0
          %318 = vmatpush1.msra.mxu0 0.0
          %319 = vmatprep.subr.mxu0 0.0
          %320 = vmatpush1.msra.mxu0 0.0
          %321 = vmatprep.subr.mxu0 0.0
          %322 = vmatpush1.msra.mxu0 0.0
          %323 = vmatprep.subr.mxu0 0.0
          %324 = vmatpush1.msra.mxu0 0.0
          %325 = vmatprep.subr.mxu0 0.0
          %326 = vmatpush1.msra.mxu0 0.0
          %327 = vmatprep.subr.mxu0 0.0
          %328 = vmatpush1.msra.mxu0 0.0
          %329 = vmatprep.subr.mxu0 0.0
          %330 = vmatpush1.msra.mxu0 0.0
          %331 = vmatprep.subr.mxu0 0.0
          %332 = vmatpush1.msra.mxu0 0.0
          %333 = vmatprep.subr.mxu0 0.0
          %334 = vmatpush1.msra.mxu0 0.0
          %335 = vmatprep.subr.mxu0 0.0
          %336 = vmatpush1.msra.mxu0 0.0
          %337 = vmatprep.subr.mxu0 0.0
          %338 = vmatpush1.msra.mxu0 0.0
          %339 = vmatprep.subr.mxu0 0.0
          %340 = vmatpush1.msra.mxu0 0.0
          %341 = vmatprep.subr.mxu0 0.0
          %342 = vmatpush1.msra.mxu0 0.0
          %343 = vmatprep.subr.mxu0 0.0
          %344 = vmatpush1.msra.mxu0 0.0
          %345 = vmatprep.subr.mxu0 0.0
          %346 = vmatpush1.msra.mxu0 0.0
          %347 = vmatprep.mubr.f32.mxu0 0.0
          %348 = vmatmul.mubr.f32.gmra.mrb[0].mxu0 %v278
          %v349 = vpop.f32.mrb[0].mxu0
          %v350 = vadd.f32 0.0, %v349
          %v351 = vpop.f32.mrb[0].mxu0
          %352 = vmatprep.mubr.f32.mxu0 0.0
          %353 = vmatmul.mubr.f32.gmra.mrb[0].mxu0 %v281
          %v354 = vpop.f32.mrb[0].mxu0
          %v355 = vadd.f32 0.0, %v354
          %v356 = vpop.f32.mrb[0].mxu0
          %357 = vdwg.mxu0
          %v359 = vsel %vm220, %v186, 0
          %v362 = vsel %vm220, %v187, 0
          %364 = vmatprep.subr.mxu0 0.0
          %365 = vmatpush1.msra.mxu0 %v350
          %366 = vmatprep.subr.mxu0 0.0
          %367 = vmatpush1.msra.mxu0 %v355
          %368 = vmatprep.subr.mxu0 0.0
          %369 = vmatpush1.msra.mxu0 0.0
          %370 = vmatprep.subr.mxu0 0.0
          %371 = vmatpush1.msra.mxu0 0.0
          %372 = vmatprep.subr.mxu0 0.0
          %373 = vmatpush1.msra.mxu0 0.0
          %374 = vmatprep.subr.mxu0 0.0
          %375 = vmatpush1.msra.mxu0 0.0
          %376 = vmatprep.subr.mxu0 0.0
          %377 = vmatpush1.msra.mxu0 0.0
          %378 = vmatprep.subr.mxu0 0.0
          %379 = vmatpush1.msra.mxu0 0.0
          %380 = vmatprep.subr.mxu0 0.0
          %381 = vmatpush1.msra.mxu0 0.0
          %382 = vmatprep.subr.mxu0 0.0
          %383 = vmatpush1.msra.mxu0 0.0
          %384 = vmatprep.subr.mxu0 0.0
          %385 = vmatpush1.msra.mxu0 0.0
          %386 = vmatprep.subr.mxu0 0.0
          %387 = vmatpush1.msra.mxu0 0.0
          %388 = vmatprep.subr.mxu0 0.0
          %389 = vmatpush1.msra.mxu0 0.0
          %390 = vmatprep.subr.mxu0 0.0
          %391 = vmatpush1.msra.mxu0 0.0
          %392 = vmatprep.subr.mxu0 0.0
          %393 = vmatpush1.msra.mxu0 0.0
          %394 = vmatprep.subr.mxu0 0.0
          %395 = vmatpush1.msra.mxu0 0.0
          %396 = vmatprep.subr.mxu0 0.0
          %397 = vmatpush1.msra.mxu0 0.0
          %398 = vmatprep.subr.mxu0 0.0
          %399 = vmatpush1.msra.mxu0 0.0
          %400 = vmatprep.subr.mxu0 0.0
          %401 = vmatpush1.msra.mxu0 0.0
          %402 = vmatprep.subr.mxu0 0.0
          %403 = vmatpush1.msra.mxu0 0.0
          %404 = vmatprep.subr.mxu0 0.0
          %405 = vmatpush1.msra.mxu0 0.0
          %406 = vmatprep.subr.mxu0 0.0
          %407 = vmatpush1.msra.mxu0 0.0
          %408 = vmatprep.subr.mxu0 0.0
          %409 = vmatpush1.msra.mxu0 0.0
          %410 = vmatprep.subr.mxu0 0.0
          %411 = vmatpush1.msra.mxu0 0.0
          %412 = vmatprep.subr.mxu0 0.0
          %413 = vmatpush1.msra.mxu0 0.0
          %414 = vmatprep.subr.mxu0 0.0
          %415 = vmatpush1.msra.mxu0 0.0
          %416 = vmatprep.subr.mxu0 0.0
          %417 = vmatpush1.msra.mxu0 0.0
          %418 = vmatprep.subr.mxu0 0.0
          %419 = vmatpush1.msra.mxu0 0.0
          %420 = vmatprep.subr.mxu0 0.0
          %421 = vmatpush1.msra.mxu0 0.0
          %422 = vmatprep.subr.mxu0 0.0
          %423 = vmatpush1.msra.mxu0 0.0
          %424 = vmatprep.subr.mxu0 0.0
          %425 = vmatpush1.msra.mxu0 0.0
          %426 = vmatprep.subr.mxu0 0.0
          %427 = vmatpush1.msra.mxu0 0.0
          %428 = vmatprep.mubr.f32.mxu0 0.0
          %429 = vmatmul.mubr.f32.gmra.mrb[0].mxu0 %v359
          %v430 = vpop.f32.mrb[0].mxu0
          %v431 = vadd.f32 0.0, %v430
          %v432 = vpop.f32.mrb[0].mxu0
          %433 = vmatprep.mubr.f32.mxu0 0.0
          %434 = vmatmul.mubr.f32.gmra.mrb[0].mxu0 %v362
          %v435 = vpop.f32.mrb[0].mxu0
          %v436 = vadd.f32 0.0, %v435
          %v437 = vpop.f32.mrb[0].mxu0
          %438 = vdwg.mxu0
          %v439 = vstv %s274
          %v440 = vmul.f32 %v439, %v431
          %v441 = vmul.f32 %v439, %v436
          %v442 = vstv %s276
          %v443 = vadd.f32 %v440, %v442
          %v444 = vadd.f32 %v441, %v442
          %v445 = vmax.f32 %v443, 0.0
          %v446 = vmax.f32 %v444, 0.0
          %v447 = vmin.f32 %v445, 1.0
          %v448 = vmin.f32 %v446, 1.0
          %s449 = scalar_lea.vmem %s145, %s214 [#allocation8]
          %450 = vst.msk [vmem:[%s449] sm:$0xff] %vm220, %v447
          %451 = vst.msk [vmem:[%s449 + $0x8] sm:$0xff] %vm220, %v448
          %v452 = vld [vmem:[%s235] sm:$0xff]
          %v453 = vld [vmem:[%s235 + $0x8] sm:$0xff]
          %v455 = vsel %vm220, %v452, 0
          %v458 = vsel %vm220, %v453, 0
          %460 = vmatprep.subr.mxu0 0.0
          %461 = vmatpush1.msra.mxu0 %v193
          %462 = vmatprep.subr.mxu0 0.0
          %463 = vmatpush1.msra.mxu0 %v194
          %464 = vmatprep.subr.mxu0 0.0
          %465 = vmatpush1.msra.mxu0 0.0
          %466 = vmatprep.subr.mxu0 0.0
          %467 = vmatpush1.msra.mxu0 0.0
          %468 = vmatprep.subr.mxu0 0.0
          %469 = vmatpush1.msra.mxu0 0.0
          %470 = vmatprep.subr.mxu0 0.0
          %471 = vmatpush1.msra.mxu0 0.0
          %472 = vmatprep.subr.mxu0 0.0
          %473 = vmatpush1.msra.mxu0 0.0
          %474 = vmatprep.subr.mxu0 0.0
          %475 = vmatpush1.msra.mxu0 0.0
          %476 = vmatprep.subr.mxu0 0.0
          %477 = vmatpush1.msra.mxu0 0.0
          %478 = vmatprep.subr.mxu0 0.0
          %479 = vmatpush1.msra.mxu0 0.0
          %480 = vmatprep.subr.mxu0 0.0
          %481 = vmatpush1.msra.mxu0 0.0
          %482 = vmatprep.subr.mxu0 0.0
          %483 = vmatpush1.msra.mxu0 0.0
          %484 = vmatprep.subr.mxu0 0.0
          %485 = vmatpush1.msra.mxu0 0.0
          %486 = vmatprep.subr.mxu0 0.0
          %487 = vmatpush1.msra.mxu0 0.0
          %488 = vmatprep.subr.mxu0 0.0
          %489 = vmatpush1.msra.mxu0 0.0
          %490 = vmatprep.subr.mxu0 0.0
          %491 = vmatpush1.msra.mxu0 0.0
          %492 = vmatprep.subr.mxu0 0.0
          %493 = vmatpush1.msra.mxu0 0.0
          %494 = vmatprep.subr.mxu0 0.0
          %495 = vmatpush1.msra.mxu0 0.0
          %496 = vmatprep.subr.mxu0 0.0
          %497 = vmatpush1.msra.mxu0 0.0
          %498 = vmatprep.subr.mxu0 0.0
          %499 = vmatpush1.msra.mxu0 0.0
          %500 = vmatprep.subr.mxu0 0.0
          %501 = vmatpush1.msra.mxu0 0.0
          %502 = vmatprep.subr.mxu0 0.0
          %503 = vmatpush1.msra.mxu0 0.0
          %504 = vmatprep.subr.mxu0 0.0
          %505 = vmatpush1.msra.mxu0 0.0
          %506 = vmatprep.subr.mxu0 0.0
          %507 = vmatpush1.msra.mxu0 0.0
          %508 = vmatprep.subr.mxu0 0.0
          %509 = vmatpush1.msra.mxu0 0.0
          %510 = vmatprep.subr.mxu0 0.0
          %511 = vmatpush1.msra.mxu0 0.0
          %512 = vmatprep.subr.mxu0 0.0
          %513 = vmatpush1.msra.mxu0 0.0
          %514 = vmatprep.subr.mxu0 0.0
          %515 = vmatpush1.msra.mxu0 0.0
          %516 = vmatprep.subr.mxu0 0.0
          %517 = vmatpush1.msra.mxu0 0.0
          %518 = vmatprep.subr.mxu0 0.0
          %519 = vmatpush1.msra.mxu0 0.0
          %520 = vmatprep.subr.mxu0 0.0
          %521 = vmatpush1.msra.mxu0 0.0
          %522 = vmatprep.subr.mxu0 0.0
          %523 = vmatpush1.msra.mxu0 0.0
          %524 = vmatprep.mubr.f32.mxu0 0.0
          %525 = vmatmul.mubr.f32.gmra.mrb[0].mxu0 %v455
          %v526 = vpop.f32.mrb[0].mxu0
          %v527 = vadd.f32 0.0, %v526
          %v528 = vpop.f32.mrb[0].mxu0
          %529 = vmatprep.mubr.f32.mxu0 0.0
          %530 = vmatmul.mubr.f32.gmra.mrb[0].mxu0 %v458
          %v531 = vpop.f32.mrb[0].mxu0
          %v532 = vadd.f32 0.0, %v531
          %v533 = vpop.f32.mrb[0].mxu0
          %534 = vdwg.mxu0
          %535 = vmatprep.subr.mxu0 0.0
          %536 = vmatpush1.msra.mxu0 %v527
          %537 = vmatprep.subr.mxu0 0.0
          %538 = vmatpush1.msra.mxu0 %v532
          %539 = vmatprep.subr.mxu0 0.0
          %540 = vmatpush1.msra.mxu0 0.0
          %541 = vmatprep.subr.mxu0 0.0
          %542 = vmatpush1.msra.mxu0 0.0
          %543 = vmatprep.subr.mxu0 0.0
          %544 = vmatpush1.msra.mxu0 0.0
          %545 = vmatprep.subr.mxu0 0.0
          %546 = vmatpush1.msra.mxu0 0.0
          %547 = vmatprep.subr.mxu0 0.0
          %548 = vmatpush1.msra.mxu0 0.0
          %549 = vmatprep.subr.mxu0 0.0
          %550 = vmatpush1.msra.mxu0 0.0
          %551 = vmatprep.subr.mxu0 0.0
          %552 = vmatpush1.msra.mxu0 0.0
          %553 = vmatprep.subr.mxu0 0.0
          %554 = vmatpush1.msra.mxu0 0.0
          %555 = vmatprep.subr.mxu0 0.0
          %556 = vmatpush1.msra.mxu0 0.0
          %557 = vmatprep.subr.mxu0 0.0
          %558 = vmatpush1.msra.mxu0 0.0
          %559 = vmatprep.subr.mxu0 0.0
          %560 = vmatpush1.msra.mxu0 0.0
          %561 = vmatprep.subr.mxu0 0.0
          %562 = vmatpush1.msra.mxu0 0.0
          %563 = vmatprep.subr.mxu0 0.0
          %564 = vmatpush1.msra.mxu0 0.0
          %565 = vmatprep.subr.mxu0 0.0
          %566 = vmatpush1.msra.mxu0 0.0
          %567 = vmatprep.subr.mxu0 0.0
          %568 = vmatpush1.msra.mxu0 0.0
          %569 = vmatprep.subr.mxu0 0.0
          %570 = vmatpush1.msra.mxu0 0.0
          %571 = vmatprep.subr.mxu0 0.0
          %572 = vmatpush1.msra.mxu0 0.0
          %573 = vmatprep.subr.mxu0 0.0
          %574 = vmatpush1.msra.mxu0 0.0
          %575 = vmatprep.subr.mxu0 0.0
          %576 = vmatpush1.msra.mxu0 0.0
          %577 = vmatprep.subr.mxu0 0.0
          %578 = vmatpush1.msra.mxu0 0.0
          %579 = vmatprep.subr.mxu0 0.0
          %580 = vmatpush1.msra.mxu0 0.0
          %581 = vmatprep.subr.mxu0 0.0
          %582 = vmatpush1.msra.mxu0 0.0
          %583 = vmatprep.subr.mxu0 0.0
          %584 = vmatpush1.msra.mxu0 0.0
          %585 = vmatprep.subr.mxu0 0.0
          %586 = vmatpush1.msra.mxu0 0.0
          %587 = vmatprep.subr.mxu0 0.0
          %588 = vmatpush1.msra.mxu0 0.0
          %589 = vmatprep.subr.mxu0 0.0
          %590 = vmatpush1.msra.mxu0 0.0
          %591 = vmatprep.subr.mxu0 0.0
          %592 = vmatpush1.msra.mxu0 0.0
          %593 = vmatprep.subr.mxu0 0.0
          %594 = vmatpush1.msra.mxu0 0.0
          %595 = vmatprep.subr.mxu0 0.0
          %596 = vmatpush1.msra.mxu0 0.0
          %597 = vmatprep.subr.mxu0 0.0
          %598 = vmatpush1.msra.mxu0 0.0
          %599 = vmatprep.mubr.f32.mxu0 0.0
          %600 = vmatmul.mubr.f32.gmra.mrb[0].mxu0 %v359
          %v601 = vpop.f32.mrb[0].mxu0
          %v602 = vadd.f32 0.0, %v601
          %v603 = vpop.f32.mrb[0].mxu0
          %604 = vmatprep.mubr.f32.mxu0 0.0
          %605 = vmatmul.mubr.f32.gmra.mrb[0].mxu0 %v362
          %v606 = vpop.f32.mrb[0].mxu0
          %v607 = vadd.f32 0.0, %v606
          %v608 = vpop.f32.mrb[0].mxu0
          %609 = vdwg.mxu0
          %v610 = vmul.f32 %v439, %v602
          %v611 = vmul.f32 %v439, %v607
          %v612 = vadd.f32 %v610, %v442
          %v613 = vadd.f32 %v611, %v442
          %v614 = vmax.f32 %v612, 0.0
          %v615 = vmax.f32 %v613, 0.0
          %v616 = vmin.f32 %v614, 1.0
          %v617 = vmin.f32 %v615, 1.0
          %s618 = scalar_lea.vmem %s145, %s234 [#allocation8]
          %619 = vst.msk [vmem:[%s618] sm:$0xff] %vm220, %v616
          %620 = vst.msk [vmem:[%s618 + $0x8] sm:$0xff] %vm220, %v617
          %v621 = vld [vmem:[%s254] sm:$0xff]
          %v622 = vld [vmem:[%s254 + $0x8] sm:$0xff]
          %v624 = vsel %vm220, %v621, 0
          %v627 = vsel %vm220, %v622, 0
          %629 = vmatprep.subr.mxu0 0.0
          %630 = vmatpush1.msra.mxu0 %v193
          %631 = vmatprep.subr.mxu0 0.0
          %632 = vmatpush1.msra.mxu0 %v194
          %633 = vmatprep.subr.mxu0 0.0
          %634 = vmatpush1.msra.mxu0 0.0
          %635 = vmatprep.subr.mxu0 0.0
          %636 = vmatpush1.msra.mxu0 0.0
          %637 = vmatprep.subr.mxu0 0.0
          %638 = vmatpush1.msra.mxu0 0.0
          %639 = vmatprep.subr.mxu0 0.0
          %640 = vmatpush1.msra.mxu0 0.0
          %641 = vmatprep.subr.mxu0 0.0
          %642 = vmatpush1.msra.mxu0 0.0
          %643 = vmatprep.subr.mxu0 0.0
          %644 = vmatpush1.msra.mxu0 0.0
          %645 = vmatprep.subr.mxu0 0.0
          %646 = vmatpush1.msra.mxu0 0.0
          %647 = vmatprep.subr.mxu0 0.0
          %648 = vmatpush1.msra.mxu0 0.0
          %649 = vmatprep.subr.mxu0 0.0
          %650 = vmatpush1.msra.mxu0 0.0
          %651 = vmatprep.subr.mxu0 0.0
          %652 = vmatpush1.msra.mxu0 0.0
          %653 = vmatprep.subr.mxu0 0.0
          %654 = vmatpush1.msra.mxu0 0.0
          %655 = vmatprep.subr.mxu0 0.0
          %656 = vmatpush1.msra.mxu0 0.0
          %657 = vmatprep.subr.mxu0 0.0
          %658 = vmatpush1.msra.mxu0 0.0
          %659 = vmatprep.subr.mxu0 0.0
          %660 = vmatpush1.msra.mxu0 0.0
          %661 = vmatprep.subr.mxu0 0.0
          %662 = vmatpush1.msra.mxu0 0.0
          %663 = vmatprep.subr.mxu0 0.0
          %664 = vmatpush1.msra.mxu0 0.0
          %665 = vmatprep.subr.mxu0 0.0
          %666 = vmatpush1.msra.mxu0 0.0
          %667 = vmatprep.subr.mxu0 0.0
          %668 = vmatpush1.msra.mxu0 0.0
          %669 = vmatprep.subr.mxu0 0.0
          %670 = vmatpush1.msra.mxu0 0.0
          %671 = vmatprep.subr.mxu0 0.0
          %672 = vmatpush1.msra.mxu0 0.0
          %673 = vmatprep.subr.mxu0 0.0
          %674 = vmatpush1.msra.mxu0 0.0
          %675 = vmatprep.subr.mxu0 0.0
          %676 = vmatpush1.msra.mxu0 0.0
          %677 = vmatprep.subr.mxu0 0.0
          %678 = vmatpush1.msra.mxu0 0.0
          %679 = vmatprep.subr.mxu0 0.0
          %680 = vmatpush1.msra.mxu0 0.0
          %681 = vmatprep.subr.mxu0 0.0
          %682 = vmatpush1.msra.mxu0 0.0
          %683 = vmatprep.subr.mxu0 0.0
          %684 = vmatpush1.msra.mxu0 0.0
          %685 = vmatprep.subr.mxu0 0.0
          %686 = vmatpush1.msra.mxu0 0.0
          %687 = vmatprep.subr.mxu0 0.0
          %688 = vmatpush1.msra.mxu0 0.0
          %689 = vmatprep.subr.mxu0 0.0
          %690 = vmatpush1.msra.mxu0 0.0
          %691 = vmatprep.subr.mxu0 0.0
          %692 = vmatpush1.msra.mxu0 0.0
          %693 = vmatprep.mubr.f32.mxu0 0.0
          %694 = vmatmul.mubr.f32.gmra.mrb[0].mxu0 %v624
          %v695 = vpop.f32.mrb[0].mxu0
          %v696 = vadd.f32 0.0, %v695
          %v697 = vpop.f32.mrb[0].mxu0
          %698 = vmatprep.mubr.f32.mxu0 0.0
          %699 = vmatmul.mubr.f32.gmra.mrb[0].mxu0 %v627
          %v700 = vpop.f32.mrb[0].mxu0
          %v701 = vadd.f32 0.0, %v700
          %v702 = vpop.f32.mrb[0].mxu0
          %703 = vdwg.mxu0
          %704 = vmatprep.subr.mxu0 0.0
          %705 = vmatpush1.msra.mxu0 %v696
          %706 = vmatprep.subr.mxu0 0.0
          %707 = vmatpush1.msra.mxu0 %v701
          %708 = vmatprep.subr.mxu0 0.0
          %709 = vmatpush1.msra.mxu0 0.0
          %710 = vmatprep.subr.mxu0 0.0
          %711 = vmatpush1.msra.mxu0 0.0
          %712 = vmatprep.subr.mxu0 0.0
          %713 = vmatpush1.msra.mxu0 0.0
          %714 = vmatprep.subr.mxu0 0.0
          %715 = vmatpush1.msra.mxu0 0.0
          %716 = vmatprep.subr.mxu0 0.0
          %717 = vmatpush1.msra.mxu0 0.0
          %718 = vmatprep.subr.mxu0 0.0
          %719 = vmatpush1.msra.mxu0 0.0
          %720 = vmatprep.subr.mxu0 0.0
          %721 = vmatpush1.msra.mxu0 0.0
          %722 = vmatprep.subr.mxu0 0.0
          %723 = vmatpush1.msra.mxu0 0.0
          %724 = vmatprep.subr.mxu0 0.0
          %725 = vmatpush1.msra.mxu0 0.0
          %726 = vmatprep.subr.mxu0 0.0
          %727 = vmatpush1.msra.mxu0 0.0
          %728 = vmatprep.subr.mxu0 0.0
          %729 = vmatpush1.msra.mxu0 0.0
          %730 = vmatprep.subr.mxu0 0.0
          %731 = vmatpush1.msra.mxu0 0.0
          %732 = vmatprep.subr.mxu0 0.0
          %733 = vmatpush1.msra.mxu0 0.0
          %734 = vmatprep.subr.mxu0 0.0
          %735 = vmatpush1.msra.mxu0 0.0
          %736 = vmatprep.subr.mxu0 0.0
          %737 = vmatpush1.msra.mxu0 0.0
          %738 = vmatprep.subr.mxu0 0.0
          %739 = vmatpush1.msra.mxu0 0.0
          %740 = vmatprep.subr.mxu0 0.0
          %741 = vmatpush1.msra.mxu0 0.0
          %742 = vmatprep.subr.mxu0 0.0
          %743 = vmatpush1.msra.mxu0 0.0
          %744 = vmatprep.subr.mxu0 0.0
          %745 = vmatpush1.msra.mxu0 0.0
          %746 = vmatprep.subr.mxu0 0.0
          %747 = vmatpush1.msra.mxu0 0.0
          %748 = vmatprep.subr.mxu0 0.0
          %749 = vmatpush1.msra.mxu0 0.0
          %750 = vmatprep.subr.mxu0 0.0
          %751 = vmatpush1.msra.mxu0 0.0
          %752 = vmatprep.subr.mxu0 0.0
          %753 = vmatpush1.msra.mxu0 0.0
          %754 = vmatprep.subr.mxu0 0.0
          %755 = vmatpush1.msra.mxu0 0.0
          %756 = vmatprep.subr.mxu0 0.0
          %757 = vmatpush1.msra.mxu0 0.0
          %758 = vmatprep.subr.mxu0 0.0
          %759 = vmatpush1.msra.mxu0 0.0
          %760 = vmatprep.subr.mxu0 0.0
          %761 = vmatpush1.msra.mxu0 0.0
          %762 = vmatprep.subr.mxu0 0.0
          %763 = vmatpush1.msra.mxu0 0.0
          %764 = vmatprep.subr.mxu0 0.0
          %765 = vmatpush1.msra.mxu0 0.0
          %766 = vmatprep.subr.mxu0 0.0
          %767 = vmatpush1.msra.mxu0 0.0
          %768 = vmatprep.mubr.f32.mxu0 0.0
          %769 = vmatmul.mubr.f32.gmra.mrb[0].mxu0 %v359
          %v770 = vpop.f32.mrb[0].mxu0
          %v771 = vadd.f32 0.0, %v770
          %v772 = vpop.f32.mrb[0].mxu0
          %773 = vmatprep.mubr.f32.mxu0 0.0
          %774 = vmatmul.mubr.f32.gmra.mrb[0].mxu0 %v362
          %v775 = vpop.f32.mrb[0].mxu0
          %v776 = vadd.f32 0.0, %v775
          %v777 = vpop.f32.mrb[0].mxu0
          %778 = vdwg.mxu0
          %v779 = vmul.f32 %v439, %v771
          %v780 = vmul.f32 %v439, %v776
          %v781 = vadd.f32 %v779, %v442
          %v782 = vadd.f32 %v780, %v442
          %v783 = vmax.f32 %v781, 0.0
          %v784 = vmax.f32 %v782, 0.0
          %v785 = vmin.f32 %v783, 1.0
          %v786 = vmin.f32 %v784, 1.0
          %s787 = scalar_lea.vmem %s145, %s253 [#allocation8]
          %788 = vst.msk [vmem:[%s787] sm:$0xff] %vm220, %v785
          %789 = vst.msk [vmem:[%s787 + $0x8] sm:$0xff] %vm220, %v786
        $region33: #{tpu_custom_call.1} parent=23 // loop_footer
          %s162 = sadd.s32 1, %s158
        $region34: #{tpu_custom_call.1} parent=23 // loop_footer_branch
          %157 = sbr.rel target = $region30
        $region35: #{tpu_custom_call.1} parent=23 // loop_exit
          _
        %s790 = sand.u32 %s62, 1
        %s791 = scalar_lea.sflag [#allocation7], %s790
        %s792 = sand.u32 %s62, 1
        %s793 = smul.addr %s792, 96
        %s794 = scalar_lea.vmem [#allocation8], %s793
        // Predicated region
        $region36: #{tpu_custom_call.1} parent=23 // pred_check
          %p795 = pneg %p72
        $region37: #{tpu_custom_call.1} parent=23 // pred_check_branch
          %797 = sbr.rel (%p795) target = $region39
        $region38: #{tpu_custom_call.1} parent=23 // pred_region
          %s798 = smul.u32 2, %s28
          %s800 = ssub.s32 1536, 1536
          %801 = vsyncadd %s791, %s800
          %s802 = smul.addr %s798, 6
          %s803 = smul.addr %s802, 128
          %s804 = scalar_lea.hbm %s3, %s803
          %s805 = sshll.u32 %s794, 4
          %s806 = int_to_ptr.vmem [resolvable:$true] %s805
          %811 = dma.vmem_to_hbm [thread:$0]  %s806, 1536, %s804, %s791, 128, 128, 8
        $region39: #{tpu_custom_call.1} parent=23 // pred_fallthru
          _
      $region24: #{tpu_custom_call.1} parent=5 // pred_fallthru
        _
      %p812 = scmp.le.s32.totalorder 2, %s23
      // Predicated region
      $region40: #{tpu_custom_call.1} parent=5 // pred_check
        %p813 = pneg %p812
      $region41: #{tpu_custom_call.1} parent=5 // pred_check_branch
        %815 = sbr.rel (%p813) target = $region43
      $region42: #{tpu_custom_call.1} parent=5 // pred_region
        %s816 = ssub.s32 %s23, 2
        // Predicated region
        $region44: #{tpu_custom_call.1} parent=42 // pred_check
          %p817 = pneg %p78
        $region45: #{tpu_custom_call.1} parent=42 // pred_check_branch
          %819 = sbr.rel (%p817) target = $region47
        $region46: #{tpu_custom_call.1} parent=42 // pred_region
          %s820 = sand.u32 %s63, 1
          %s821 = scalar_lea.sflag [#allocation7], %s820
          %s822 = sand.u32 %s63, 1
          %s823 = smul.addr %s822, 96
          %s824 = scalar_lea.vmem [#allocation8], %s823
          %825 = dma.done %s821, 1536
        $region47: #{tpu_custom_call.1} parent=42 // pred_fallthru
          _
      $region43: #{tpu_custom_call.1} parent=5 // pred_fallthru
        _
    $region6: #{tpu_custom_call.1} parent=1 // loop_footer
      %s27 = sadd.s32 1, %s23
    $region7: #{tpu_custom_call.1} parent=1 // loop_footer_branch
      %22 = sbr.rel target = $region3
    $region8: #{tpu_custom_call.1} parent=1 // loop_exit
      _
    %826 = vsyncpa [#allocation6], 1
    %s827 = scalar_lea.sflag [#allocation6], 1
    %828 = vsyncpa %s827, 1
    %829 = vsyncpa [#allocation7], 1
    %s830 = scalar_lea.sflag [#allocation7], 1
    %831 = vsyncpa %s830, 1

</llo_original>
